<compile_context>
chip_gen: v6e
topology: v6e:2x2x1
jax: 0.10.0
libtpu: 0.0.40
codegen_flags: <defaults>
</compile_context>

<pallas_src>
import jax
import jax.numpy as jnp
from jax.experimental import pallas as pl
from jax.experimental.pallas import tpu as pltpu


def _f_xy_kernel(func_ref, x_ref, y_ref, o_ref):
    # func_ref: SMEM (4,) f32 scalars; x_ref/y_ref/o_ref: VMEM tiles.
    f0 = func_ref[0]
    f1 = func_ref[1]
    f2 = func_ref[2]
    f3 = func_ref[3]
    # Scalar-unit subtractions (free alongside the vector work).
    d20 = f2 - f0
    d31 = f3 - f1

    x = x_ref[...]
    y = y_ref[...]
    # Bilinear interpolation refactor (equivalent to the 4-term formula up to
    # rounding, well inside 1e-5 tolerance):
    #   a = f0*(1-x) + f2*x   (value along y = 0)
    #   b = f1*(1-x) + f3*x   (value along y = 1)
    #   out = a*(1-y) + b*y
    a = f0 + d20 * x
    b = f1 + d31 * x
    o_ref[...] = (a + (b - a) * y).astype(o_ref.dtype)


_LANES = (512, 256, 128)


def _round_up(a, m):
    return (a + m - 1) // m * m


def f_xy_forward(func_xy, x, y, *, tm=2048, flat_chunk=64 * 1024,
                 vmem_limit_bytes=40 << 20):
    """Pallas implementation of f_xy_FunctionEvaluationModel.forward.

    func_xy: (4,) coefficients (frozen parameter).
    x, y:    identical-shape tensors (any rank); elementwise bilinear eval.
    """
    assert x.shape == y.shape, "x and y must have identical shapes"
    assert func_xy.shape == (4,), "func_xy must have 4 coefficients"

    orig_shape = x.shape
    out_dtype = x.dtype
    n = x.size
    itemsize = jnp.dtype(out_dtype).itemsize

    func_xy_f32 = func_xy.astype(jnp.float32)
    cost = pl.CostEstimate(flops=5 * n, transcendentals=0,
                           bytes_accessed=3 * n * itemsize)
    cparams = pltpu.CompilerParams(
        dimension_semantics=("parallel",),
        vmem_limit_bytes=vmem_limit_bytes,
    )

    # Largest lane width in {512, 256, 128} that divides n (lane-dense stores).
    lane = next((l for l in _LANES if n % l == 0), None)

    if lane is not None:
        # ---- lane-dense 2-D slab path (no padding; reshape is a free bitcast).
        rows = n // lane
        x2 = x.reshape(rows, lane)
        y2 = y.reshape(rows, lane)

        if rows <= 16:
            # Tiny array: one full-extent block (legal regardless of tiling).
            tm_eff = rows
        else:
            # >= 4 grid steps so DMA/compute pipeline and both v7x TensorCores
            # get work; multiple of 16 keeps bf16 sublane tiling legal.
            tm_eff = min(tm, _round_up(pl.cdiv(rows, 4), 16))
        grid = (pl.cdiv(rows, tm_eff),)

        out2 = pl.pallas_call(
            _f_xy_kernel,
            out_shape=jax.ShapeDtypeStruct((rows, lane), out_dtype),
            grid=grid,
            in_specs=[
                pl.BlockSpec(memory_space=pltpu.MemorySpace.SMEM),  # 4 scalars
                pl.BlockSpec((tm_eff, lane), lambda i: (i, 0)),     # x tile
                pl.BlockSpec((tm_eff, lane), lambda i: (i, 0)),     # y tile
            ],
            out_specs=pl.BlockSpec((tm_eff, lane), lambda i: (i, 0)),
            compiler_params=cparams,
            cost_estimate=cost,
        )(func_xy_f32, x2, y2)
        return out2.reshape(orig_shape)

    # ---- ragged path (n % 128 != 0): run directly on the flat 1-D array.
    # No padded input copies and no output slice; Pallas masks the ragged last
    # block.  1-D blocks are less vreg-efficient but the op stays HBM-bound and
    # this avoids the 2-3x extra HBM traffic of pad+slice.
    x1 = x.reshape(n)
    y1 = y.reshape(n)
    blk = n if n <= flat_chunk else flat_chunk  # flat_chunk is a multiple of 1024
    grid = (pl.cdiv(n, blk),)

    out1 = pl.pallas_call(
        _f_xy_kernel,
        out_shape=jax.ShapeDtypeStruct((n,), out_dtype),
        grid=grid,
        in_specs=[
            pl.BlockSpec(memory_space=pltpu.MemorySpace.SMEM),
            pl.BlockSpec((blk,), lambda i: (i,)),
            pl.BlockSpec((blk,), lambda i: (i,)),
        ],
        out_specs=pl.BlockSpec((blk,), lambda i: (i,)),
        compiler_params=cparams,
        cost_estimate=cost,
    )(func_xy_f32, x1, y1)
    return out1.reshape(orig_shape)


def f_xy_reference(func_xy, x, y):
    return (func_xy[0] * (1 - x) * (1 - y)
            + func_xy[1] * (1 - x) * y
            + func_xy[2] * x * (1 - y)
            + func_xy[3] * x * y)


if __name__ == "__main__":
    key = jax.random.PRNGKey(0)
    kx, ky, kf = jax.random.split(key, 3)

    # Deterministic "parameter" initialization for the 4 corner coefficients.
    func_xy = jax.random.normal(kf, (4,), dtype=jnp.float32)

    # Primary test shape (NCHW), matching the module's typical use.
    B, C, H, W = 2, 4, 16, 16
    x = jax.random.uniform(kx, (B, C, H, W), dtype=jnp.float32)
    y = jax.random.uniform(ky, (B, C, H, W), dtype=jnp.float32)
    out = jax.block_until_ready(f_xy_forward(func_xy, x, y))
    ref = f_xy_reference(func_xy, x, y)
    assert out.shape == (B, C, H, W)
    assert jnp.allclose(out, ref, atol=1e-5, rtol=1e-5), "mismatch vs reference"

    # Mid-size check: exercises the multi-step pipelined grid path (grid >= 4).
    kx2, ky2 = jax.random.split(kx)
    x2 = jax.random.uniform(kx2, (4, 8, 64, 128), dtype=jnp.float32)
    y2 = jax.random.uniform(ky2, (4, 8, 64, 128), dtype=jnp.float32)
    out2 = jax.block_until_ready(f_xy_forward(func_xy, x2, y2))
    ref2 = f_xy_reference(func_xy, x2, y2)
    assert out2.shape == x2.shape
    assert jnp.allclose(out2, ref2, atol=1e-5, rtol=1e-5), "mismatch (mid-size)"

    # Ragged check (n % 128 != 0): flat 1-D kernel path, no pad/slice copies.
    kx3, ky3 = jax.random.split(ky)
    x3 = jax.random.uniform(kx3, (3, 5, 7, 11), dtype=jnp.float32)
    y3 = jax.random.uniform(ky3, (3, 5, 7, 11), dtype=jnp.float32)
    out3 = jax.block_until_ready(f_xy_forward(func_xy, x3, y3))
    ref3 = f_xy_reference(func_xy, x3, y3)
    assert out3.shape == x3.shape
    assert jnp.allclose(out3, ref3, atol=1e-5, rtol=1e-5), "mismatch (ragged)"

    print("KERNEL_OK")
</pallas_src>

<mosaic_0001>
module attributes {stable_mosaic.version = 11 : i64} {
  func.func @_f_xy_kernel(%arg0: i32, %arg1: memref<4xf32, #tpu.memory_space<smem>>, %arg2: memref<4x512xf32, #tpu.memory_space<vmem>>, %arg3: memref<4x512xf32, #tpu.memory_space<vmem>>, %arg4: memref<4x512xf32, #tpu.memory_space<vmem>>) attributes {dimension_semantics = [#tpu.dimension_semantics<parallel>], iteration_bounds = array<i64: 1>, scalar_prefetch = 0 : i64, scratch_operands = 0 : i64, tpu.core_type = #tpu.core_type<tc>, window_params = [{transform_indices = @transform_0, window_bounds = array<i64: 4>}, {transform_indices = @transform_1, window_bounds = array<i64: 4, 512>}, {transform_indices = @transform_2, window_bounds = array<i64: 4, 512>}, {transform_indices = @transform_3, window_bounds = array<i64: 4, 512>}]} {
    %c0 = arith.constant 0 : index
    %0 = memref.load %arg1[%c0] : memref<4xf32, #tpu.memory_space<smem>>
    %c1 = arith.constant 1 : index
    %1 = memref.load %arg1[%c1] : memref<4xf32, #tpu.memory_space<smem>>
    %c2 = arith.constant 2 : index
    %2 = memref.load %arg1[%c2] : memref<4xf32, #tpu.memory_space<smem>>
    %c3 = arith.constant 3 : index
    %3 = memref.load %arg1[%c3] : memref<4xf32, #tpu.memory_space<smem>>
    %4 = arith.subf %2, %0 : f32
    %5 = arith.subf %3, %1 : f32
    %c0_0 = arith.constant 0 : index
    %c0_1 = arith.constant 0 : index
    %6 = vector.load %arg2[%c0_0, %c0_1] : memref<4x512xf32, #tpu.memory_space<vmem>>, vector<4x512xf32>
    %c0_2 = arith.constant 0 : index
    %c0_3 = arith.constant 0 : index
    %7 = vector.load %arg3[%c0_2, %c0_3] : memref<4x512xf32, #tpu.memory_space<vmem>>, vector<4x512xf32>
    %8 = vector.broadcast %4 : f32 to vector<4x512xf32>
    %9 = arith.mulf %8, %6 : vector<4x512xf32>
    %10 = vector.broadcast %0 : f32 to vector<4x512xf32>
    %11 = arith.addf %10, %9 : vector<4x512xf32>
    %12 = vector.broadcast %5 : f32 to vector<4x512xf32>
    %13 = arith.mulf %12, %6 : vector<4x512xf32>
    %14 = vector.broadcast %1 : f32 to vector<4x512xf32>
    %15 = arith.addf %14, %13 : vector<4x512xf32>
    %16 = arith.subf %15, %11 : vector<4x512xf32>
    %17 = arith.mulf %16, %7 : vector<4x512xf32>
    %18 = arith.addf %11, %17 : vector<4x512xf32>
    %c0_4 = arith.constant 0 : index
    %c0_5 = arith.constant 0 : index
    %19 = vector.load %arg4[%c0_4, %c0_5] : memref<4x512xf32, #tpu.memory_space<vmem>>, vector<4x512xf32>
    tpu.vector_store %arg4[%c0_4, %c0_5], %18 {strides = array<i32>} : memref<4x512xf32, #tpu.memory_space<vmem>>, vector<4x512xf32>,
    return
  }
  func.func @transform_0(%arg0: i32) -> i32 {
    %c0_i32 = arith.constant 0 : i32
    %c0_i32_0 = arith.constant 0 : i32
    return %c0_i32 : i32
  }
  func.func @transform_1(%arg0: i32) -> (i32, i32) {
    %c0_i32 = arith.constant 0 : i32
    %c0_i32_0 = arith.constant 0 : i32
    return %arg0, %c0_i32 : i32, i32
  }
  func.func @transform_2(%arg0: i32) -> (i32, i32) {
    %c0_i32 = arith.constant 0 : i32
    %c0_i32_0 = arith.constant 0 : i32
    return %arg0, %c0_i32 : i32, i32
  }
  func.func @transform_3(%arg0: i32) -> (i32, i32) {
    %c0_i32 = arith.constant 0 : i32
    %c0_i32_0 = arith.constant 0 : i32
    return %arg0, %c0_i32 : i32, i32
  }
}

</mosaic_0001>

<llo_original>
// kernel: tpu_custom_call.1
$region0: #{tpu_custom_call.1}
  #allocation0 [shape = 'u32[]', space=smem, size = 0x4, offset = 0x4, fixed_abs, tag = 'smem constant byte address 0x4 - core index']
  #allocation1 [shape = 'u32[144,128]{1,0:T(1,128)}', space=vmem, size = 0x12000, scoped, tag = 'internal scratch']
  %s0 = inlined_call_operand.hbm [shape: f32[4], index: 0, kind: input, shape index: {}]
  %s1 = inlined_call_operand.hbm [shape: f32[4,512], index: 1, kind: input, shape index: {}]
  %s2 = inlined_call_operand.hbm [shape: f32[4,512], index: 2, kind: input, shape index: {}]
  %s3 = inlined_call_operand.hbm [shape: f32[4,512], index: 3, kind: output, shape index: {}]
  %s4 = sld [smem:[#allocation0]]
  $region34: #{tpu_custom_call.1} parent=0
    _
  %s6 = ssub.s32 1, %s4
  %s7 = scalar_select 0, %s6, %s4
  $region1: #{tpu_custom_call.1} parent=0
    #allocation2 [shape = 'u8[512]{0}', space=smem, size = 0x200, scoped, tag = 'input window, operand 0, single buffered']
    #allocation3 [shape = 's32[1]{0}', space=sflag, size = 0x4, scoped, tag = 'scoped memory for tpu_custom_call.1']
    #allocation4 [shape = 's32[1]{0}', space=sflag, size = 0x4, scoped, tag = 'scoped memory for tpu_custom_call.1']
    #allocation5 [shape = 's32[1]{0}', space=sflag, size = 0x4, scoped, tag = 'scoped memory for tpu_custom_call.1']
    #allocation6 [shape = 'u8[8192]{0}', space=vmem, size = 0x2000, scoped, tag = 'input window, operand 1, single buffered']
    #allocation7 [shape = 'u8[8192]{0}', space=vmem, size = 0x2000, scoped, tag = 'input window, operand 2, single buffered']
    #allocation8 [shape = 's32[1]{0}', space=sflag, size = 0x4, scoped, tag = 'scoped memory for tpu_custom_call.1']
    #allocation9 [shape = 'u8[8192]{0}', space=vmem, size = 0x2000, scoped, tag = 'output window, operand 0, single buffered']
    %8 = vsyncpa [#allocation5], 0
    %9 = vsyncpa [#allocation3], 0
    %10 = vsyncpa [#allocation8], 0
    %11 = vsyncpa [#allocation4], 0
    // Predicated region
    $region2: #{tpu_custom_call.1} parent=1 // pred_check
      _
    $region3: #{tpu_custom_call.1} parent=1 // pred_check_branch
      %13 = sbr.rel (0) target = $region5
    $region4: #{tpu_custom_call.1} parent=1 // pred_region
      %s15 = ssub.s32 16, 16
      %16 = vsyncadd [#allocation5], %s15
      %19 = dma.hbm_to_smem %s0, 16, [#allocation2], [#allocation5]
    $region5: #{tpu_custom_call.1} parent=1 // pred_fallthru
      _
    // Predicated region
    $region6: #{tpu_custom_call.1} parent=1 // pred_check
      _
    $region7: #{tpu_custom_call.1} parent=1 // pred_check_branch
      %21 = sbr.rel (0) target = $region9
    $region8: #{tpu_custom_call.1} parent=1 // pred_region
      %s23 = ssub.s32 256, 256
      %24 = vsyncadd [#allocation3], %s23
      %s26 = sshll.u32 [#allocation6], 4
      %s27 = int_to_ptr.vmem [resolvable:$true] %s26
      %29 = dma.hbm_to_vmem [thread:$0]  %s1, 256, %s27, [#allocation3]
    $region9: #{tpu_custom_call.1} parent=1 // pred_fallthru
      _
    // Predicated region
    $region10: #{tpu_custom_call.1} parent=1 // pred_check
      _
    $region11: #{tpu_custom_call.1} parent=1 // pred_check_branch
      %31 = sbr.rel (0) target = $region13
    $region12: #{tpu_custom_call.1} parent=1 // pred_region
      %s33 = ssub.s32 256, 256
      %34 = vsyncadd [#allocation8], %s33
      %s36 = sshll.u32 [#allocation7], 4
      %s37 = int_to_ptr.vmem [resolvable:$true] %s36
      %39 = dma.hbm_to_vmem [thread:$0]  %s2, 256, %s37, [#allocation8]
    $region13: #{tpu_custom_call.1} parent=1 // pred_fallthru
      _
    // Predicated region
    $region14: #{tpu_custom_call.1} parent=1 // pred_check
      _
    $region15: #{tpu_custom_call.1} parent=1 // pred_check_branch
      %41 = sbr.rel (0) target = $region17
    $region16: #{tpu_custom_call.1} parent=1 // pred_region
      %42 = dma.done [#allocation5], 16
    $region17: #{tpu_custom_call.1} parent=1 // pred_fallthru
      _
    // Predicated region
    $region18: #{tpu_custom_call.1} parent=1 // pred_check
      _
    $region19: #{tpu_custom_call.1} parent=1 // pred_check_branch
      %44 = sbr.rel (0) target = $region21
    $region20: #{tpu_custom_call.1} parent=1 // pred_region
      %45 = dma.done [#allocation3], 256
    $region21: #{tpu_custom_call.1} parent=1 // pred_fallthru
      _
    // Predicated region
    $region22: #{tpu_custom_call.1} parent=1 // pred_check
      _
    $region23: #{tpu_custom_call.1} parent=1 // pred_check_branch
      %47 = sbr.rel (0) target = $region25
    $region24: #{tpu_custom_call.1} parent=1 // pred_region
      %48 = dma.done [#allocation8], 256
    $region25: #{tpu_custom_call.1} parent=1 // pred_fallthru
      _
    %49 = sfence
    %s50 = sld [smem:[#allocation2]]
    %s51 = sld [smem:[#allocation2 + $0x1]]
    %s52 = sld [smem:[#allocation2 + $0x2]]
    %s53 = sld [smem:[#allocation2 + $0x3]]
    %s54 = ssub.f32 %s52, %s50
    %s55 = ssub.f32 %s53, %s51
    %v56 = vld [vmem:[#allocation6] sm:$0xff]
    %v57 = vld [vmem:[#allocation6 + $0x8] sm:$0xff]
    %v58 = vld [vmem:[#allocation7] sm:$0xff]
    %v59 = vld [vmem:[#allocation7 + $0x8] sm:$0xff]
    %v60 = vstv %s54
    %v61 = vmul.f32 %v60, %v56
    %v62 = vmul.f32 %v60, %v57
    %v63 = vstv %s50
    %v64 = vadd.f32 %v63, %v61
    %v65 = vadd.f32 %v63, %v62
    %v66 = vstv %s55
    %v67 = vmul.f32 %v66, %v56
    %v68 = vmul.f32 %v66, %v57
    %v69 = vstv %s51
    %v70 = vadd.f32 %v69, %v67
    %v71 = vadd.f32 %v69, %v68
    %v72 = vsub.f32 %v70, %v64
    %v73 = vsub.f32 %v71, %v65
    %v74 = vmul.f32 %v72, %v58
    %v75 = vmul.f32 %v73, %v59
    %v76 = vadd.f32 %v64, %v74
    %v77 = vadd.f32 %v65, %v75
    %78 = vst [vmem:[#allocation9] sm:$0xff] %v76
    %79 = vst [vmem:[#allocation9 + $0x8] sm:$0xff] %v77
    // Predicated region
    $region26: #{tpu_custom_call.1} parent=1 // pred_check
      _
    $region27: #{tpu_custom_call.1} parent=1 // pred_check_branch
      %81 = sbr.rel (0) target = $region29
    $region28: #{tpu_custom_call.1} parent=1 // pred_region
      %s83 = ssub.s32 256, 256
      %84 = vsyncadd [#allocation4], %s83
      %s86 = sshll.u32 [#allocation9], 4
      %s87 = int_to_ptr.vmem [resolvable:$true] %s86
      %89 = dma.vmem_to_hbm [thread:$0]  %s87, 256, %s3, [#allocation4]
    $region29: #{tpu_custom_call.1} parent=1 // pred_fallthru
      _
    // Predicated region
    $region30: #{tpu_custom_call.1} parent=1 // pred_check
      _
    $region31: #{tpu_custom_call.1} parent=1 // pred_check_branch
      %91 = sbr.rel (0) target = $region33
    $region32: #{tpu_custom_call.1} parent=1 // pred_region
      %92 = dma.done [#allocation4], 256
    $region33: #{tpu_custom_call.1} parent=1 // pred_fallthru
      _
    %93 = vsyncpa [#allocation3], 1
    %94 = vsyncpa [#allocation8], 1
    %95 = vsyncpa [#allocation4], 1
    %96 = vsyncpa [#allocation5], 1

</llo_original>
